<compile_context>
chip_gen: v7x
topology: tpu7x:2x2x1
jax: 0.10.0
libtpu: 0.0.40
codegen_flags: <defaults>
</compile_context>

<pallas_src>
import jax
import jax.numpy as jnp
from jax.experimental import pallas as pl
from jax.experimental.pallas import tpu as pltpu


def _round_up(x, m):
    return (x + m - 1) // m * m


# -----------------------------------------------------------------------------
# Pallas kernel: fused (one-hot -> Linear) -> ReLU -> Linear -> ReLU -> Linear
# -----------------------------------------------------------------------------
def generator_mlp_kernel(z_ref, lab_ref, w1z_ref, w1c_ref, b1_ref,
                         w2_ref, b2_ref, w3_ref, b3_ref, o_ref):
    z = z_ref[...]                       # (TB, noise_dim) f32
    lab = lab_ref[...]                   # (TB, 1) int32

    # ---- layer 1: relu(z @ W1[:noise_dim] + W1[noise_dim + label] + b1) ----
    h1 = jnp.dot(z, w1z_ref[...], preferred_element_type=jnp.float32)

    w1c = w1c_ref[...]                   # (num_classes, H1) label rows of W1
    num_classes = w1c.shape[0]
    if num_classes <= 32:
        # per-row "dynamic slice" of W1's label rows as a chain of selects
        # (pure VPU work, no gather, no extra MXU pass); out-of-range labels
        # contribute zero, matching F.one_hot semantics of the reference path.
        emb = jnp.zeros_like(h1)
        for c in range(num_classes):     # static unroll; num_classes is small
            emb = jnp.where(lab == c, w1c[c:c + 1, :], emb)
    else:
        # fallback for large class counts: build one-hot in-kernel (still no
        # HBM round-trip of x) and use a tiny MXU matmul.
        class_ids = jax.lax.broadcasted_iota(
            jnp.int32, (lab.shape[0], num_classes), 1)
        onehot = (lab == class_ids).astype(jnp.float32)
        emb = jnp.dot(onehot, w1c, preferred_element_type=jnp.float32)

    h1 = jnp.maximum(h1 + emb + b1_ref[...], 0.0)

    # ---- layer 2 ----
    h2 = jnp.dot(h1, w2_ref[...], preferred_element_type=jnp.float32)
    h2 = jnp.maximum(h2 + b2_ref[...], 0.0)

    # ---- layer 3 ----
    out = jnp.dot(h2, w3_ref[...], preferred_element_type=jnp.float32)
    o_ref[...] = (out + b3_ref[...]).astype(o_ref.dtype)


# -----------------------------------------------------------------------------
# Wrapper: batch-tiled pallas_call; weights/biases stay VMEM-resident.
# -----------------------------------------------------------------------------
def generator_forward(z, labels, params, num_classes, tile_b=512):
    w1, b1, w2, b2, w3, b3 = params
    batch, noise_dim = z.shape
    h1_dim = w1.shape[1]
    h2_dim = w2.shape[1]
    output_dim = w3.shape[1]

    # Split W1 into the noise rows and the label (one-hot) rows; the one-hot
    # matmul becomes a row-select of w1c inside the kernel.
    w1z = w1[:noise_dim]                 # (noise_dim, 32)
    w1c = w1[noise_dim:]                 # (num_classes, 32)

    # Batch tiling: multiple of 8 (f32 sublane), capped at tile_b.
    padded8 = _round_up(batch, 8)
    tb = min(tile_b, padded8)
    padded = _round_up(batch, tb)
    if padded != batch:
        z = jnp.pad(z, ((0, padded - batch), (0, 0)))
        labels = jnp.pad(labels, (0, padded - batch))
    labels2d = labels.astype(jnp.int32).reshape(padded, 1)

    grid = (padded // tb,)
    resident = lambda i: (0, 0)          # weights/biases: same block every step

    out = pl.pallas_call(
        generator_mlp_kernel,
        out_shape=jax.ShapeDtypeStruct((padded, output_dim), jnp.float32),
        grid=grid,
        in_specs=[
            pl.BlockSpec((tb, noise_dim), lambda i: (i, 0)),       # z tile
            pl.BlockSpec((tb, 1), lambda i: (i, 0)),               # labels tile
            pl.BlockSpec((noise_dim, h1_dim), resident),           # W1 (noise rows)
            pl.BlockSpec((num_classes, h1_dim), resident),         # W1 (label rows)
            pl.BlockSpec((1, h1_dim), resident),                   # b1
            pl.BlockSpec((h1_dim, h2_dim), resident),              # W2
            pl.BlockSpec((1, h2_dim), resident),                   # b2
            pl.BlockSpec((h2_dim, output_dim), resident),          # W3
            pl.BlockSpec((1, output_dim), resident),               # b3
        ],
        out_specs=pl.BlockSpec((tb, output_dim), lambda i: (i, 0)),
        compiler_params=pltpu.CompilerParams(
            dimension_semantics=("parallel",)),
    )(z, labels2d, w1z, w1c, b1, w2, b2, w3, b3)

    return out[:batch]


# -----------------------------------------------------------------------------
# Deterministic parameter init (matches PyTorch nn.Linear default: U(-k, k),
# k = 1/sqrt(fan_in)); weights stored transposed as (in, out).
# -----------------------------------------------------------------------------
def init_generator_params(key, noise_dim, num_classes, output_dim):
    d_in = noise_dim + num_classes
    dims = [(d_in, 32), (32, 64), (64, output_dim)]
    params = []
    for (fan_in, fan_out) in dims:
        key, kw, kb = jax.random.split(key, 3)
        bound = 1.0 / (fan_in ** 0.5)
        w = jax.random.uniform(kw, (fan_in, fan_out), jnp.float32, -bound, bound)
        b = jax.random.uniform(kb, (1, fan_out), jnp.float32, -bound, bound)
        params += [w, b]
    return tuple(params)


def reference_forward(z, labels, params, num_classes):
    w1, b1, w2, b2, w3, b3 = params
    labels_onehot = jax.nn.one_hot(labels, num_classes, dtype=z.dtype)
    x = jnp.concatenate([z, labels_onehot], axis=1)
    h1 = jnp.maximum(x @ w1 + b1, 0.0)
    h2 = jnp.maximum(h1 @ w2 + b2, 0.0)
    return h2 @ w3 + b3


if __name__ == "__main__":
    noise_dim = 16
    num_classes = 4
    output_dim = 16

    key = jax.random.PRNGKey(0)
    key, kz, kl, kp = jax.random.split(key, 4)
    params = init_generator_params(kp, noise_dim, num_classes, output_dim)

    # --- test 1: small batch (single grid step) ---
    batch = 8
    z = jax.random.normal(kz, (batch, noise_dim), dtype=jnp.float32)
    labels = jax.random.randint(kl, (batch,), 0, num_classes, dtype=jnp.int32)

    out = jax.block_until_ready(generator_forward(z, labels, params, num_classes))
    ref = reference_forward(z, labels, params, num_classes)
    assert out.shape == (batch, output_dim)
    assert jnp.allclose(out, ref, atol=1e-5, rtol=1e-5)

    # --- test 2: exercise the batch grid + padding path ---
    key, kz2, kl2 = jax.random.split(key, 3)
    batch2 = 40
    z2 = jax.random.normal(kz2, (batch2, noise_dim), dtype=jnp.float32)
    labels2 = jax.random.randint(kl2, (batch2,), 0, num_classes, dtype=jnp.int32)

    out2 = jax.block_until_ready(
        generator_forward(z2, labels2, params, num_classes, tile_b=16))
    ref2 = reference_forward(z2, labels2, params, num_classes)
    assert out2.shape == (batch2, output_dim)
    assert jnp.allclose(out2, ref2, atol=1e-5, rtol=1e-5)

    print("KERNEL_OK")
</pallas_src>

<mosaic_0001>
module attributes {stable_mosaic.version = 11 : i64} {
  func.func @generator_mlp_kernel(%arg0: i32, %arg1: memref<8x16xf32, #tpu.memory_space<vmem>>, %arg2: memref<8x1xi32, #tpu.memory_space<vmem>>, %arg3: memref<16x32xf32, #tpu.memory_space<vmem>>, %arg4: memref<4x32xf32, #tpu.memory_space<vmem>>, %arg5: memref<1x32xf32, #tpu.memory_space<vmem>>, %arg6: memref<32x64xf32, #tpu.memory_space<vmem>>, %arg7: memref<1x64xf32, #tpu.memory_space<vmem>>, %arg8: memref<64x16xf32, #tpu.memory_space<vmem>>, %arg9: memref<1x16xf32, #tpu.memory_space<vmem>>, %arg10: memref<8x16xf32, #tpu.memory_space<vmem>>) attributes {dimension_semantics = [#tpu.dimension_semantics<parallel>], iteration_bounds = array<i64: 1>, scalar_prefetch = 0 : i64, scratch_operands = 0 : i64, tpu.core_type = #tpu.core_type<tc>, window_params = [{transform_indices = @transform_0, window_bounds = array<i64: 8, 16>}, {transform_indices = @transform_1, window_bounds = array<i64: 8, 1>}, {pipeline_mode = #tpu.pipeline_mode<synchronous>, transform_indices = @transform_2, window_bounds = array<i64: 16, 32>}, {pipeline_mode = #tpu.pipeline_mode<synchronous>, transform_indices = @transform_3, window_bounds = array<i64: 4, 32>}, {pipeline_mode = #tpu.pipeline_mode<synchronous>, transform_indices = @transform_4, window_bounds = array<i64: 1, 32>}, {pipeline_mode = #tpu.pipeline_mode<synchronous>, transform_indices = @transform_5, window_bounds = array<i64: 32, 64>}, {pipeline_mode = #tpu.pipeline_mode<synchronous>, transform_indices = @transform_6, window_bounds = array<i64: 1, 64>}, {pipeline_mode = #tpu.pipeline_mode<synchronous>, transform_indices = @transform_7, window_bounds = array<i64: 64, 16>}, {pipeline_mode = #tpu.pipeline_mode<synchronous>, transform_indices = @transform_8, window_bounds = array<i64: 1, 16>}, {transform_indices = @transform_9, window_bounds = array<i64: 8, 16>}]} {
    %c0 = arith.constant 0 : index
    %c0_0 = arith.constant 0 : index
    %0 = vector.load %arg1[%c0, %c0_0] : memref<8x16xf32, #tpu.memory_space<vmem>>, vector<8x16xf32>
    %c0_1 = arith.constant 0 : index
    %c0_2 = arith.constant 0 : index
    %1 = vector.load %arg2[%c0_1, %c0_2] : memref<8x1xi32, #tpu.memory_space<vmem>>, vector<8x1xi32>
    %c0_3 = arith.constant 0 : index
    %c0_4 = arith.constant 0 : index
    %2 = vector.load %arg3[%c0_3, %c0_4] : memref<16x32xf32, #tpu.memory_space<vmem>>, vector<16x32xf32>
    %cst = arith.constant dense<0.000000e+00> : vector<8x32xf32>
    %3 = tpu.matmul %0, %2, %cst {dimension_numbers = #tpu.dot_dimension_numbers<[1], [0], [0], [1], [0, 0, 1, 1], [], []>} : vector<8x16xf32>, vector<16x32xf32>, vector<8x32xf32> -> vector<8x32xf32>
    %c0_5 = arith.constant 0 : index
    %c0_6 = arith.constant 0 : index
    %4 = vector.load %arg4[%c0_5, %c0_6] : memref<4x32xf32, #tpu.memory_space<vmem>>, vector<4x32xf32>
    %cst_7 = arith.constant 0.000000e+00 : f32
    %5 = vector.broadcast %cst_7 : f32 to vector<8x32xf32>
    %c0_i32 = arith.constant 0 : i32
    %6 = vector.broadcast %c0_i32 : i32 to vector<8x1xi32>
    %7 = arith.cmpi eq, %1, %6 : vector<8x1xi32>
    %8 = vector.extract_strided_slice %4 {offsets = [0, 0], sizes = [1, 32], strides = [1, 1]} : vector<4x32xf32> to vector<1x32xf32>
    %9 = vector.shape_cast %7 : vector<8x1xi1> to vector<8x1xi1>
    %10 = vector.broadcast %9 : vector<8x1xi1> to vector<8x32xi1>
    %11 = vector.shape_cast %8 : vector<1x32xf32> to vector<1x32xf32>
    %12 = vector.broadcast %11 : vector<1x32xf32> to vector<8x32xf32>
    %13 = arith.select %10, %12, %5 : vector<8x32xi1>, vector<8x32xf32>
    %c1_i32 = arith.constant 1 : i32
    %14 = vector.broadcast %c1_i32 : i32 to vector<8x1xi32>
    %15 = arith.cmpi eq, %1, %14 : vector<8x1xi32>
    %16 = vector.extract_strided_slice %4 {offsets = [1, 0], sizes = [1, 32], strides = [1, 1]} : vector<4x32xf32> to vector<1x32xf32>
    %17 = vector.shape_cast %15 : vector<8x1xi1> to vector<8x1xi1>
    %18 = vector.broadcast %17 : vector<8x1xi1> to vector<8x32xi1>
    %19 = vector.shape_cast %16 : vector<1x32xf32> to vector<1x32xf32>
    %20 = vector.broadcast %19 : vector<1x32xf32> to vector<8x32xf32>
    %21 = arith.select %18, %20, %13 : vector<8x32xi1>, vector<8x32xf32>
    %c2_i32 = arith.constant 2 : i32
    %22 = vector.broadcast %c2_i32 : i32 to vector<8x1xi32>
    %23 = arith.cmpi eq, %1, %22 : vector<8x1xi32>
    %24 = vector.extract_strided_slice %4 {offsets = [2, 0], sizes = [1, 32], strides = [1, 1]} : vector<4x32xf32> to vector<1x32xf32>
    %25 = vector.shape_cast %23 : vector<8x1xi1> to vector<8x1xi1>
    %26 = vector.broadcast %25 : vector<8x1xi1> to vector<8x32xi1>
    %27 = vector.shape_cast %24 : vector<1x32xf32> to vector<1x32xf32>
    %28 = vector.broadcast %27 : vector<1x32xf32> to vector<8x32xf32>
    %29 = arith.select %26, %28, %21 : vector<8x32xi1>, vector<8x32xf32>
    %c3_i32 = arith.constant 3 : i32
    %30 = vector.broadcast %c3_i32 : i32 to vector<8x1xi32>
    %31 = arith.cmpi eq, %1, %30 : vector<8x1xi32>
    %32 = vector.extract_strided_slice %4 {offsets = [3, 0], sizes = [1, 32], strides = [1, 1]} : vector<4x32xf32> to vector<1x32xf32>
    %33 = vector.shape_cast %31 : vector<8x1xi1> to vector<8x1xi1>
    %34 = vector.broadcast %33 : vector<8x1xi1> to vector<8x32xi1>
    %35 = vector.shape_cast %32 : vector<1x32xf32> to vector<1x32xf32>
    %36 = vector.broadcast %35 : vector<1x32xf32> to vector<8x32xf32>
    %37 = arith.select %34, %36, %29 : vector<8x32xi1>, vector<8x32xf32>
    %38 = arith.addf %3, %37 : vector<8x32xf32>
    %c0_8 = arith.constant 0 : index
    %c0_9 = arith.constant 0 : index
    %39 = vector.load %arg5[%c0_8, %c0_9] : memref<1x32xf32, #tpu.memory_space<vmem>>, vector<1x32xf32>
    %40 = vector.broadcast %39 : vector<1x32xf32> to vector<8x32xf32>
    %41 = arith.addf %38, %40 : vector<8x32xf32>
    %cst_10 = arith.constant 0.000000e+00 : f32
    %42 = vector.broadcast %cst_10 : f32 to vector<8x32xf32>
    %43 = arith.maximumf %41, %42 : vector<8x32xf32>
    %c0_11 = arith.constant 0 : index
    %c0_12 = arith.constant 0 : index
    %44 = vector.load %arg6[%c0_11, %c0_12] : memref<32x64xf32, #tpu.memory_space<vmem>>, vector<32x64xf32>
    %cst_13 = arith.constant dense<0.000000e+00> : vector<8x64xf32>
    %45 = tpu.matmul %43, %44, %cst_13 {dimension_numbers = #tpu.dot_dimension_numbers<[1], [0], [0], [1], [0, 0, 1, 1], [], []>} : vector<8x32xf32>, vector<32x64xf32>, vector<8x64xf32> -> vector<8x64xf32>
    %c0_14 = arith.constant 0 : index
    %c0_15 = arith.constant 0 : index
    %46 = vector.load %arg7[%c0_14, %c0_15] : memref<1x64xf32, #tpu.memory_space<vmem>>, vector<1x64xf32>
    %47 = vector.broadcast %46 : vector<1x64xf32> to vector<8x64xf32>
    %48 = arith.addf %45, %47 : vector<8x64xf32>
    %cst_16 = arith.constant 0.000000e+00 : f32
    %49 = vector.broadcast %cst_16 : f32 to vector<8x64xf32>
    %50 = arith.maximumf %48, %49 : vector<8x64xf32>
    %c0_17 = arith.constant 0 : index
    %c0_18 = arith.constant 0 : index
    %51 = vector.load %arg8[%c0_17, %c0_18] : memref<64x16xf32, #tpu.memory_space<vmem>>, vector<64x16xf32>
    %cst_19 = arith.constant dense<0.000000e+00> : vector<8x16xf32>
    %52 = tpu.matmul %50, %51, %cst_19 {dimension_numbers = #tpu.dot_dimension_numbers<[1], [0], [0], [1], [0, 0, 1, 1], [], []>} : vector<8x64xf32>, vector<64x16xf32>, vector<8x16xf32> -> vector<8x16xf32>
    %c0_20 = arith.constant 0 : index
    %c0_21 = arith.constant 0 : index
    %53 = vector.load %arg9[%c0_20, %c0_21] : memref<1x16xf32, #tpu.memory_space<vmem>>, vector<1x16xf32>
    %54 = vector.broadcast %53 : vector<1x16xf32> to vector<8x16xf32>
    %55 = arith.addf %52, %54 : vector<8x16xf32>
    %c0_22 = arith.constant 0 : index
    %c0_23 = arith.constant 0 : index
    %56 = vector.load %arg10[%c0_22, %c0_23] : memref<8x16xf32, #tpu.memory_space<vmem>>, vector<8x16xf32>
    tpu.vector_store %arg10[%c0_22, %c0_23], %55 {strides = array<i32>} : memref<8x16xf32, #tpu.memory_space<vmem>>, vector<8x16xf32>,
    return
  }
  func.func @transform_0(%arg0: i32) -> (i32, i32) {
    %c0_i32 = arith.constant 0 : i32
    %c0_i32_0 = arith.constant 0 : i32
    return %arg0, %c0_i32 : i32, i32
  }
  func.func @transform_1(%arg0: i32) -> (i32, i32) {
    %c0_i32 = arith.constant 0 : i32
    %c0_i32_0 = arith.constant 0 : i32
    return %arg0, %c0_i32 : i32, i32
  }
  func.func @transform_2(%arg0: i32) -> (i32, i32) {
    %c0_i32 = arith.constant 0 : i32
    %c0_i32_0 = arith.constant 0 : i32
    %c0_i32_1 = arith.constant 0 : i32
    return %c0_i32, %c0_i32_0 : i32, i32
  }
  func.func @transform_3(%arg0: i32) -> (i32, i32) {
    %c0_i32 = arith.constant 0 : i32
    %c0_i32_0 = arith.constant 0 : i32
    %c0_i32_1 = arith.constant 0 : i32
    return %c0_i32, %c0_i32_0 : i32, i32
  }
  func.func @transform_4(%arg0: i32) -> (i32, i32) {
    %c0_i32 = arith.constant 0 : i32
    %c0_i32_0 = arith.constant 0 : i32
    %c0_i32_1 = arith.constant 0 : i32
    return %c0_i32, %c0_i32_0 : i32, i32
  }
  func.func @transform_5(%arg0: i32) -> (i32, i32) {
    %c0_i32 = arith.constant 0 : i32
    %c0_i32_0 = arith.constant 0 : i32
    %c0_i32_1 = arith.constant 0 : i32
    return %c0_i32, %c0_i32_0 : i32, i32
  }
  func.func @transform_6(%arg0: i32) -> (i32, i32) {
    %c0_i32 = arith.constant 0 : i32
    %c0_i32_0 = arith.constant 0 : i32
    %c0_i32_1 = arith.constant 0 : i32
    return %c0_i32, %c0_i32_0 : i32, i32
  }
  func.func @transform_7(%arg0: i32) -> (i32, i32) {
    %c0_i32 = arith.constant 0 : i32
    %c0_i32_0 = arith.constant 0 : i32
    %c0_i32_1 = arith.constant 0 : i32
    return %c0_i32, %c0_i32_0 : i32, i32
  }
  func.func @transform_8(%arg0: i32) -> (i32, i32) {
    %c0_i32 = arith.constant 0 : i32
    %c0_i32_0 = arith.constant 0 : i32
    %c0_i32_1 = arith.constant 0 : i32
    return %c0_i32, %c0_i32_0 : i32, i32
  }
  func.func @transform_9(%arg0: i32) -> (i32, i32) {
    %c0_i32 = arith.constant 0 : i32
    %c0_i32_0 = arith.constant 0 : i32
    return %arg0, %c0_i32 : i32, i32
  }
}

</mosaic_0001>

<llo_original>
// kernel: tpu_custom_call.1
$region0: #{tpu_custom_call.1}
  #allocation0 [shape = 'u32[]', space=smem, size = 0x4, offset = 0x4, fixed_abs, tag = 'smem constant byte address 0x4 - core index']
  #allocation1 [shape = 'u32[144,128]{1,0:T(1,128)}', space=vmem, size = 0x12000, scoped, tag = 'internal scratch']
  %s0 = inlined_call_operand.vmem [shape: f32[8,16], index: 0, kind: input, shape index: {}]
  %s1 = inlined_call_operand.vmem [shape: s32[8,1], index: 1, kind: input, shape index: {}]
  %s2 = inlined_call_operand.vmem [shape: f32[16,32], index: 2, kind: input, shape index: {}]
  %s3 = inlined_call_operand.vmem [shape: f32[4,32], index: 3, kind: input, shape index: {}]
  %s4 = inlined_call_operand.vmem [shape: f32[1,32], index: 4, kind: input, shape index: {}]
  %s5 = inlined_call_operand.vmem [shape: f32[32,64], index: 5, kind: input, shape index: {}]
  %s6 = inlined_call_operand.vmem [shape: f32[1,64], index: 6, kind: input, shape index: {}]
  %s7 = inlined_call_operand.vmem [shape: f32[64,16], index: 7, kind: input, shape index: {}]
  %s8 = inlined_call_operand.vmem [shape: f32[1,16], index: 8, kind: input, shape index: {}]
  %s9 = inlined_call_operand.hbm [shape: f32[8,16], index: 9, kind: output, shape index: {}]
  %s10 = sld [smem:[#allocation0]]
  $region46: #{tpu_custom_call.1} parent=0
    _
  %s12 = ssub.s32 1, %s10
  %s13 = scalar_select 0, %s12, %s10
  $region1: #{tpu_custom_call.1} parent=0
    #allocation2 [shape = 'u8[4096]{0}', space=vmem, size = 0x1000, scoped, tag = 'output window, operand 0, single buffered']
    #allocation3 [shape = 's32[1]{0}', space=sflag, size = 0x4, scoped, tag = 'scoped memory for tpu_custom_call.1']
    %14 = vsyncpa [#allocation3], 0
    // Predicated region
    $region2: #{tpu_custom_call.1} parent=1 // pred_check
      _
    $region3: #{tpu_custom_call.1} parent=1 // pred_check_branch
      %16 = sbr.rel (0) target = $region5
    $region4: #{tpu_custom_call.1} parent=1 // pred_region
      _
    $region5: #{tpu_custom_call.1} parent=1 // pred_fallthru
      _
    // Predicated region
    $region6: #{tpu_custom_call.1} parent=1 // pred_check
      _
    $region7: #{tpu_custom_call.1} parent=1 // pred_check_branch
      %18 = sbr.rel (0) target = $region9
    $region8: #{tpu_custom_call.1} parent=1 // pred_region
      _
    $region9: #{tpu_custom_call.1} parent=1 // pred_fallthru
      _
    // Predicated region
    $region10: #{tpu_custom_call.1} parent=1 // pred_check
      _
    $region11: #{tpu_custom_call.1} parent=1 // pred_check_branch
      %20 = sbr.rel (0) target = $region13
    $region12: #{tpu_custom_call.1} parent=1 // pred_region
      _
    $region13: #{tpu_custom_call.1} parent=1 // pred_fallthru
      _
    // Predicated region
    $region14: #{tpu_custom_call.1} parent=1 // pred_check
      _
    $region15: #{tpu_custom_call.1} parent=1 // pred_check_branch
      %22 = sbr.rel (0) target = $region17
    $region16: #{tpu_custom_call.1} parent=1 // pred_region
      _
    $region17: #{tpu_custom_call.1} parent=1 // pred_fallthru
      _
    // Predicated region
    $region18: #{tpu_custom_call.1} parent=1 // pred_check
      _
    $region19: #{tpu_custom_call.1} parent=1 // pred_check_branch
      %24 = sbr.rel (0) target = $region21
    $region20: #{tpu_custom_call.1} parent=1 // pred_region
      _
    $region21: #{tpu_custom_call.1} parent=1 // pred_fallthru
      _
    // Predicated region
    $region22: #{tpu_custom_call.1} parent=1 // pred_check
      _
    $region23: #{tpu_custom_call.1} parent=1 // pred_check_branch
      %26 = sbr.rel (0) target = $region25
    $region24: #{tpu_custom_call.1} parent=1 // pred_region
      _
    $region25: #{tpu_custom_call.1} parent=1 // pred_fallthru
      _
    // Predicated region
    $region26: #{tpu_custom_call.1} parent=1 // pred_check
      _
    $region27: #{tpu_custom_call.1} parent=1 // pred_check_branch
      %28 = sbr.rel (0) target = $region29
    $region28: #{tpu_custom_call.1} parent=1 // pred_region
      _
    $region29: #{tpu_custom_call.1} parent=1 // pred_fallthru
      _
    // Predicated region
    $region30: #{tpu_custom_call.1} parent=1 // pred_check
      _
    $region31: #{tpu_custom_call.1} parent=1 // pred_check_branch
      %30 = sbr.rel (0) target = $region33
    $region32: #{tpu_custom_call.1} parent=1 // pred_region
      _
    $region33: #{tpu_custom_call.1} parent=1 // pred_fallthru
      _
    // Predicated region
    $region34: #{tpu_custom_call.1} parent=1 // pred_check
      _
    $region35: #{tpu_custom_call.1} parent=1 // pred_check_branch
      %32 = sbr.rel (0) target = $region37
    $region36: #{tpu_custom_call.1} parent=1 // pred_region
      _
    $region37: #{tpu_custom_call.1} parent=1 // pred_fallthru
      _
    %v33 = vld [vmem:[%s0] sm:$0xff]
    %v34 = vld [vmem:[%s1] sm:$0xff]
    %v35 = vld [vmem:[%s2] sm:$0xff]
    %v36 = vld [vmem:[%s2 + $0x8] sm:$0xff]
    %v37 = vld [vmem:[%s3] sm:$0xf]
    %vm38 = vcmp.eq.s32.totalorder %v34, 0
    %v39 = vsel %vm38, 1, 0
    %40 = vset.pattern.permute.xlu0 0
    %41 = vperm.xlu0 %40, %v39
    %v42 = vpop.permute.xlu0 %41
    %vm43 = vcmp.eq.s32.totalorder %v42, 1
    %v44 = vlaneseq
    %v45 = vshrl.u32 %v44, 7
    %v46 = vsub.s32 0, %v45
    %v47 = vrot.slane %v37, %v46
    %v48 = vsel %vm43, %v47, 0.0
    %vm49 = vcmp.eq.s32.totalorder %v34, 1
    %v50 = vsel %vm49, 1, 0
    %51 = vset.pattern.permute.xlu0 0
    %52 = vperm.xlu0 %51, %v50
    %v53 = vpop.permute.xlu0 %52
    %vm54 = vcmp.eq.s32.totalorder %v53, 1
    %v55 = vlaneseq
    %v56 = vshrl.u32 %v55, 7
    %v57 = vsub.s32 1, %v56
    %v58 = vrot.slane %v37, %v57
    %v59 = vsel %vm54, %v58, %v48
    %vm60 = vcmp.eq.s32.totalorder %v34, 2
    %v61 = vsel %vm60, 1, 0
    %62 = vset.pattern.permute.xlu0 0
    %63 = vperm.xlu0 %62, %v61
    %v64 = vpop.permute.xlu0 %63
    %vm65 = vcmp.eq.s32.totalorder %v64, 1
    %v66 = vlaneseq
    %v67 = vshrl.u32 %v66, 7
    %v68 = vsub.s32 2, %v67
    %v69 = vrot.slane %v37, %v68
    %v70 = vsel %vm65, %v69, %v59
    %vm71 = vcmp.eq.s32.totalorder %v34, 3
    %v72 = vsel %vm71, 1, 0
    %73 = vset.pattern.permute.xlu0 0
    %74 = vperm.xlu0 %73, %v72
    %v75 = vpop.permute.xlu0 %74
    %vm76 = vcmp.eq.s32.totalorder %v75, 1
    %v77 = vlaneseq
    %v78 = vshrl.u32 %v77, 7
    %v79 = vsub.s32 3, %v78
    %v80 = vrot.slane %v37, %v79
    %v81 = vsel %vm76, %v80, %v70
    %vm82 = vcmask 130048
    %v84 = vsel %vm82, %v33, 0
    %86 = vmatprep.subr.mxu0 0.0
    %87 = vmatpush1.msra.mxu0 %v35
    %88 = vmatprep.subr.mxu0 0.0
    %89 = vmatpush1.msra.mxu0 %v36
    %90 = vmatprep.subr.mxu0 0.0
    %91 = vmatpush1.msra.mxu0 0.0
    %92 = vmatprep.subr.mxu0 0.0
    %93 = vmatpush1.msra.mxu0 0.0
    %94 = vmatprep.subr.mxu0 0.0
    %95 = vmatpush1.msra.mxu0 0.0
    %96 = vmatprep.subr.mxu0 0.0
    %97 = vmatpush1.msra.mxu0 0.0
    %98 = vmatprep.subr.mxu0 0.0
    %99 = vmatpush1.msra.mxu0 0.0
    %100 = vmatprep.subr.mxu0 0.0
    %101 = vmatpush1.msra.mxu0 0.0
    %102 = vmatprep.subr.mxu0 0.0
    %103 = vmatpush1.msra.mxu0 0.0
    %104 = vmatprep.subr.mxu0 0.0
    %105 = vmatpush1.msra.mxu0 0.0
    %106 = vmatprep.subr.mxu0 0.0
    %107 = vmatpush1.msra.mxu0 0.0
    %108 = vmatprep.subr.mxu0 0.0
    %109 = vmatpush1.msra.mxu0 0.0
    %110 = vmatprep.subr.mxu0 0.0
    %111 = vmatpush1.msra.mxu0 0.0
    %112 = vmatprep.subr.mxu0 0.0
    %113 = vmatpush1.msra.mxu0 0.0
    %114 = vmatprep.subr.mxu0 0.0
    %115 = vmatpush1.msra.mxu0 0.0
    %116 = vmatprep.subr.mxu0 0.0
    %117 = vmatpush1.msra.mxu0 0.0
    %118 = vmatprep.subr.mxu0 0.0
    %119 = vmatpush1.msra.mxu0 0.0
    %120 = vmatprep.subr.mxu0 0.0
    %121 = vmatpush1.msra.mxu0 0.0
    %122 = vmatprep.subr.mxu0 0.0
    %123 = vmatpush1.msra.mxu0 0.0
    %124 = vmatprep.subr.mxu0 0.0
    %125 = vmatpush1.msra.mxu0 0.0
    %126 = vmatprep.subr.mxu0 0.0
    %127 = vmatpush1.msra.mxu0 0.0
    %128 = vmatprep.subr.mxu0 0.0
    %129 = vmatpush1.msra.mxu0 0.0
    %130 = vmatprep.subr.mxu0 0.0
    %131 = vmatpush1.msra.mxu0 0.0
    %132 = vmatprep.subr.mxu0 0.0
    %133 = vmatpush1.msra.mxu0 0.0
    %134 = vmatprep.subr.mxu0 0.0
    %135 = vmatpush1.msra.mxu0 0.0
    %136 = vmatprep.subr.mxu0 0.0
    %137 = vmatpush1.msra.mxu0 0.0
    %138 = vmatprep.subr.mxu0 0.0
    %139 = vmatpush1.msra.mxu0 0.0
    %140 = vmatprep.subr.mxu0 0.0
    %141 = vmatpush1.msra.mxu0 0.0
    %142 = vmatprep.subr.mxu0 0.0
    %143 = vmatpush1.msra.mxu0 0.0
    %144 = vmatprep.subr.mxu0 0.0
    %145 = vmatpush1.msra.mxu0 0.0
    %146 = vmatprep.subr.mxu0 0.0
    %147 = vmatpush1.msra.mxu0 0.0
    %148 = vmatprep.subr.mxu0 0.0
    %149 = vmatpush1.msra.mxu0 0.0
    %150 = vmatprep.mubr.f32.mxu0 0.0
    %151 = vmatmul.mubr.f32.gmra.mrb[0].mxu0 %v84
    %v152 = vpop.f32.mrb[0].mxu0
    %v153 = vadd.f32 %v81, %v152
    %v154 = vpop.f32.mrb[0].mxu0
    %155 = vdwg.mxu0
    %v156 = vld [vmem:[%s4] sm:$0x1]
    %v158 = vlaneseq
    %v159 = vshrl.u32 %v158, 7
    %v160 = vsub.s32 0, %v159
    %v161 = vrot.slane %v156, %v160
    %v163 = vadd.f32 %v153, %v161
    %v164 = vmax.f32 %v163, 0.0
    %v165 = vld [vmem:[%s5] sm:$0xff]
    %v166 = vld [vmem:[%s5 + $0x8] sm:$0xff]
    %v167 = vld [vmem:[%s5 + $0x10] sm:$0xff]
    %v168 = vld [vmem:[%s5 + $0x18] sm:$0xff]
    %v169 = vld [vmem:[%s6] sm:$0x1]
    %v171 = vlaneseq
    %v172 = vshrl.u32 %v171, 7
    %v173 = vsub.s32 0, %v172
    %v174 = vrot.slane %v169, %v173
    %vm176 = vcmask 261120
    %v178 = vsel %vm176, %v164, 0
    %180 = vmatprep.subr.mxu0 0.0
    %181 = vmatpush1.msra.mxu0 %v165
    %182 = vmatprep.subr.mxu0 0.0
    %183 = vmatpush1.msra.mxu0 %v166
    %184 = vmatprep.subr.mxu0 0.0
    %185 = vmatpush1.msra.mxu0 %v167
    %186 = vmatprep.subr.mxu0 0.0
    %187 = vmatpush1.msra.mxu0 %v168
    %188 = vmatprep.subr.mxu0 0.0
    %189 = vmatpush1.msra.mxu0 0.0
    %190 = vmatprep.subr.mxu0 0.0
    %191 = vmatpush1.msra.mxu0 0.0
    %192 = vmatprep.subr.mxu0 0.0
    %193 = vmatpush1.msra.mxu0 0.0
    %194 = vmatprep.subr.mxu0 0.0
    %195 = vmatpush1.msra.mxu0 0.0
    %196 = vmatprep.subr.mxu0 0.0
    %197 = vmatpush1.msra.mxu0 0.0
    %198 = vmatprep.subr.mxu0 0.0
    %199 = vmatpush1.msra.mxu0 0.0
    %200 = vmatprep.subr.mxu0 0.0
    %201 = vmatpush1.msra.mxu0 0.0
    %202 = vmatprep.subr.mxu0 0.0
    %203 = vmatpush1.msra.mxu0 0.0
    %204 = vmatprep.subr.mxu0 0.0
    %205 = vmatpush1.msra.mxu0 0.0
    %206 = vmatprep.subr.mxu0 0.0
    %207 = vmatpush1.msra.mxu0 0.0
    %208 = vmatprep.subr.mxu0 0.0
    %209 = vmatpush1.msra.mxu0 0.0
    %210 = vmatprep.subr.mxu0 0.0
    %211 = vmatpush1.msra.mxu0 0.0
    %212 = vmatprep.subr.mxu0 0.0
    %213 = vmatpush1.msra.mxu0 0.0
    %214 = vmatprep.subr.mxu0 0.0
    %215 = vmatpush1.msra.mxu0 0.0
    %216 = vmatprep.subr.mxu0 0.0
    %217 = vmatpush1.msra.mxu0 0.0
    %218 = vmatprep.subr.mxu0 0.0
    %219 = vmatpush1.msra.mxu0 0.0
    %220 = vmatprep.subr.mxu0 0.0
    %221 = vmatpush1.msra.mxu0 0.0
    %222 = vmatprep.subr.mxu0 0.0
    %223 = vmatpush1.msra.mxu0 0.0
    %224 = vmatprep.subr.mxu0 0.0
    %225 = vmatpush1.msra.mxu0 0.0
    %226 = vmatprep.subr.mxu0 0.0
    %227 = vmatpush1.msra.mxu0 0.0
    %228 = vmatprep.subr.mxu0 0.0
    %229 = vmatpush1.msra.mxu0 0.0
    %230 = vmatprep.subr.mxu0 0.0
    %231 = vmatpush1.msra.mxu0 0.0
    %232 = vmatprep.subr.mxu0 0.0
    %233 = vmatpush1.msra.mxu0 0.0
    %234 = vmatprep.subr.mxu0 0.0
    %235 = vmatpush1.msra.mxu0 0.0
    %236 = vmatprep.subr.mxu0 0.0
    %237 = vmatpush1.msra.mxu0 0.0
    %238 = vmatprep.subr.mxu0 0.0
    %239 = vmatpush1.msra.mxu0 0.0
    %240 = vmatprep.subr.mxu0 0.0
    %241 = vmatpush1.msra.mxu0 0.0
    %242 = vmatprep.subr.mxu0 0.0
    %243 = vmatpush1.msra.mxu0 0.0
    %244 = vmatprep.mubr.f32.mxu0 0.0
    %245 = vmatmul.mubr.f32.gmra.mrb[0].mxu0 %v178
    %v246 = vpop.f32.mrb[0].mxu0
    %v247 = vadd.f32 %v174, %v246
    %v248 = vpop.f32.mrb[0].mxu0
    %249 = vdwg.mxu0
    %v250 = vmax.f32 %v247, 0.0
    %v251 = vld [vmem:[%s7] sm:$0xff]
    %v252 = vld [vmem:[%s7 + $0x8] sm:$0xff]
    %v253 = vld [vmem:[%s7 + $0x10] sm:$0xff]
    %v254 = vld [vmem:[%s7 + $0x18] sm:$0xff]
    %v255 = vld [vmem:[%s7 + $0x20] sm:$0xff]
    %v256 = vld [vmem:[%s7 + $0x28] sm:$0xff]
    %v257 = vld [vmem:[%s7 + $0x30] sm:$0xff]
    %v258 = vld [vmem:[%s7 + $0x38] sm:$0xff]
    %v259 = vld [vmem:[%s8] sm:$0x1]
    %v261 = vlaneseq
    %v262 = vshrl.u32 %v261, 7
    %v263 = vsub.s32 0, %v262
    %v264 = vrot.slane %v259, %v263
    %vm266 = vcmask 523264
    %v268 = vsel %vm266, %v250, 0
    %270 = vmatprep.subr.mxu0 0.0
    %271 = vmatpush1.msra.mxu0 %v251
    %272 = vmatprep.subr.mxu0 0.0
    %273 = vmatpush1.msra.mxu0 %v252
    %274 = vmatprep.subr.mxu0 0.0
    %275 = vmatpush1.msra.mxu0 %v253
    %276 = vmatprep.subr.mxu0 0.0
    %277 = vmatpush1.msra.mxu0 %v254
    %278 = vmatprep.subr.mxu0 0.0
    %279 = vmatpush1.msra.mxu0 %v255
    %280 = vmatprep.subr.mxu0 0.0
    %281 = vmatpush1.msra.mxu0 %v256
    %282 = vmatprep.subr.mxu0 0.0
    %283 = vmatpush1.msra.mxu0 %v257
    %284 = vmatprep.subr.mxu0 0.0
    %285 = vmatpush1.msra.mxu0 %v258
    %286 = vmatprep.subr.mxu0 0.0
    %287 = vmatpush1.msra.mxu0 0.0
    %288 = vmatprep.subr.mxu0 0.0
    %289 = vmatpush1.msra.mxu0 0.0
    %290 = vmatprep.subr.mxu0 0.0
    %291 = vmatpush1.msra.mxu0 0.0
    %292 = vmatprep.subr.mxu0 0.0
    %293 = vmatpush1.msra.mxu0 0.0
    %294 = vmatprep.subr.mxu0 0.0
    %295 = vmatpush1.msra.mxu0 0.0
    %296 = vmatprep.subr.mxu0 0.0
    %297 = vmatpush1.msra.mxu0 0.0
    %298 = vmatprep.subr.mxu0 0.0
    %299 = vmatpush1.msra.mxu0 0.0
    %300 = vmatprep.subr.mxu0 0.0
    %301 = vmatpush1.msra.mxu0 0.0
    %302 = vmatprep.subr.mxu0 0.0
    %303 = vmatpush1.msra.mxu0 0.0
    %304 = vmatprep.subr.mxu0 0.0
    %305 = vmatpush1.msra.mxu0 0.0
    %306 = vmatprep.subr.mxu0 0.0
    %307 = vmatpush1.msra.mxu0 0.0
    %308 = vmatprep.subr.mxu0 0.0
    %309 = vmatpush1.msra.mxu0 0.0
    %310 = vmatprep.subr.mxu0 0.0
    %311 = vmatpush1.msra.mxu0 0.0
    %312 = vmatprep.subr.mxu0 0.0
    %313 = vmatpush1.msra.mxu0 0.0
    %314 = vmatprep.subr.mxu0 0.0
    %315 = vmatpush1.msra.mxu0 0.0
    %316 = vmatprep.subr.mxu0 0.0
    %317 = vmatpush1.msra.mxu0 0.0
    %318 = vmatprep.subr.mxu0 0.0
    %319 = vmatpush1.msra.mxu0 0.0
    %320 = vmatprep.subr.mxu0 0.0
    %321 = vmatpush1.msra.mxu0 0.0
    %322 = vmatprep.subr.mxu0 0.0
    %323 = vmatpush1.msra.mxu0 0.0
    %324 = vmatprep.subr.mxu0 0.0
    %325 = vmatpush1.msra.mxu0 0.0
    %326 = vmatprep.subr.mxu0 0.0
    %327 = vmatpush1.msra.mxu0 0.0
    %328 = vmatprep.subr.mxu0 0.0
    %329 = vmatpush1.msra.mxu0 0.0
    %330 = vmatprep.subr.mxu0 0.0
    %331 = vmatpush1.msra.mxu0 0.0
    %332 = vmatprep.subr.mxu0 0.0
    %333 = vmatpush1.msra.mxu0 0.0
    %334 = vmatprep.mubr.f32.mxu0 0.0
    %335 = vmatmul.mubr.f32.gmra.mrb[0].mxu0 %v268
    %v336 = vpop.f32.mrb[0].mxu0
    %v337 = vadd.f32 %v264, %v336
    %v338 = vpop.f32.mrb[0].mxu0
    %339 = vdwg.mxu0
    %340 = vst.msk [vmem:[#allocation2] sm:$0xff] %vm82, %v337
    // Predicated region
    $region38: #{tpu_custom_call.1} parent=1 // pred_check
      _
    $region39: #{tpu_custom_call.1} parent=1 // pred_check_branch
      %342 = sbr.rel (0) target = $region41
    $region40: #{tpu_custom_call.1} parent=1 // pred_region
      %s344 = ssub.s32 128, 128
      %345 = vsyncadd [#allocation3], %s344
      %s347 = sshll.u32 [#allocation2], 4
      %s348 = int_to_ptr.vmem [resolvable:$true] %s347
      %350 = dma.vmem_to_hbm [thread:$0]  %s348, 128, %s9, [#allocation3]
    $region41: #{tpu_custom_call.1} parent=1 // pred_fallthru
      _
    // Predicated region
    $region42: #{tpu_custom_call.1} parent=1 // pred_check
      _
    $region43: #{tpu_custom_call.1} parent=1 // pred_check_branch
      %352 = sbr.rel (0) target = $region45
    $region44: #{tpu_custom_call.1} parent=1 // pred_region
      %353 = dma.done [#allocation3], 128
    $region45: #{tpu_custom_call.1} parent=1 // pred_fallthru
      _
    %354 = vsyncpa [#allocation3], 1

</llo_original>
